<compile_context>
chip_gen: v7x
topology: tpu7x:2x2x1
jax: 0.10.0
libtpu: 0.0.40
codegen_flags: <defaults>
</compile_context>

<pallas_src>
import functools

import jax
import jax.numpy as jnp
from jax.experimental import pallas as pl
from jax.experimental.pallas import tpu as pltpu


def _round_up(x: int, m: int) -> int:
    return ((x + m - 1) // m) * m


def _block_revin_kernel(x_ref, w_ref, b_ref, o_ref, *, enc_len: int, eps: float):
    # x_ref / o_ref: (T, TL)  -- time on sublanes, batch*channel on lanes.
    # w_ref / b_ref: (1, TL)  -- per-lane affine parameters.
    T, TL = x_ref.shape

    xf = x_ref[...]
    if xf.dtype != jnp.float32:
        xf = xf.astype(jnp.float32)        # no-op (no extra temp) for f32 input

    # ---- encoder-prefix statistics (sublane reduction, lane-parallel) ------
    # Static, sublane-aligned prefix slice; mask only the partial 8-row group.
    e8 = min(T, _round_up(enc_len, 8))
    pad = e8 - enc_len                     # static python int in [0, 7]
    xe = xf[:e8, :]
    if pad:
        t_idx = jax.lax.broadcasted_iota(jnp.int32, (e8, TL), 0)
        xe = jnp.where(t_idx < enc_len, xe, 0.0)

    inv_n = 1.0 / float(enc_len)
    mean = jnp.sum(xe, axis=0, keepdims=True) * inv_n          # (1, TL)
    d = xe - mean
    ss = jnp.sum(d * d, axis=0, keepdims=True)
    if pad:
        # each masked row contributed (0 - mean)^2; remove it (tiny per-lane op)
        ss = ss - float(pad) * (mean * mean)
    var = ss * inv_n                                           # population variance

    inv_std = jax.lax.rsqrt(var + eps)                         # EUP, ~free

    w = w_ref[...].astype(jnp.float32)                         # (1, TL)
    b = b_ref[...].astype(jnp.float32)
    scale = w * inv_std
    shift = b - mean * scale

    # ---- single fused multiply-add over the whole (T, TL) tile -------------
    o_ref[...] = (xf * scale + shift).astype(o_ref.dtype)


def _pick_lane_tile(lanes: int, lane_target: int, two_tc: bool) -> int:
    """Largest multiple-of-128 divisor of `lanes` that fits `lane_target`."""
    if lanes <= 128:
        return lanes                       # full (and only) tile
    assert lanes % 128 == 0
    k = lanes // 128

    def best_under(limit):
        b = 128
        for m in range(1, k + 1):
            if k % m == 0 and 128 * m <= limit:
                b = 128 * m
        return b

    tl = best_under(max(128, lane_target))
    # On a 2-TensorCore part, make sure there are >=2 parallel grid steps.
    if two_tc and tl == lanes and lanes >= 256:
        tl = best_under(lanes // 2)
    return tl


def block_revin_norm(x, affine_weight, affine_bias, *, masking_ratio: float,
                     eps: float = 1e-5, block_lanes=None):
    """BlockRevIN.forward(x, mode='norm') with affine=True, subtract_last=False."""
    B, T, C = x.shape
    enc_len = T - int(masking_ratio * T)
    assert 1 <= enc_len <= T, "encoder prefix must be non-empty"

    # ---- chip-generation-aware budgets --------------------------------------
    try:
        vmem_cap = int(pltpu.get_tpu_info().vmem_capacity_bytes)
    except Exception:
        vmem_cap = 64 * 1024 * 1024                   # conservative (v7x-sized)
    if vmem_cap >= 128 * 1024 * 1024:                 # v5e / v6e: 128 MiB VMEM
        vmem_limit = 64 * 1024 * 1024
        target_block_bytes = 4 * 1024 * 1024
        two_tc = False
    else:                                             # v7x-class: 64 MiB, 2 TCs
        vmem_limit = 32 * 1024 * 1024
        target_block_bytes = 2 * 1024 * 1024
        two_tc = True

    itemsize = jnp.dtype(x.dtype).itemsize

    # ---- lane-dense layout: (B, T, C) -> (T, B*C), pad lanes to 128 ---------
    L = B * C
    x_t = jnp.transpose(x, (1, 0, 2)).reshape(T, L)
    w_l = jnp.tile(jnp.asarray(affine_weight).reshape(C), B)   # lane b*C+c -> w[c]
    b_l = jnp.tile(jnp.asarray(affine_bias).reshape(C), B)

    Lp = L if L <= 128 else _round_up(L, 128)
    if Lp != L:
        x_t = jnp.pad(x_t, ((0, 0), (0, Lp - L)))
        w_l = jnp.pad(w_l, (0, Lp - L))
        b_l = jnp.pad(b_l, (0, Lp - L))
    w_l = w_l.reshape(1, Lp)
    b_l = b_l.reshape(1, Lp)

    # ---- lane-tile selection -------------------------------------------------
    if block_lanes is not None:
        TL = int(block_lanes)
        assert Lp % TL == 0 and (TL == Lp or TL % 128 == 0), \
            "block_lanes must divide the (padded) lane axis and be a multiple of 128"
    else:
        # Per-lane working set: 2x(in+out) pipeline buffers + ~3 f32 temps.
        per_lane_pipeline = T * (4 * itemsize + 3 * 4)
        lane_budget = max(128, int(0.9 * vmem_limit) // max(1, per_lane_pipeline))
        lane_target = max(128, min(target_block_bytes // max(1, T * itemsize),
                                   lane_budget))
        TL = _pick_lane_tile(Lp, lane_target, two_tc)

    grid = (Lp // TL,)

    kernel = functools.partial(_block_revin_kernel, enc_len=enc_len, eps=eps)

    out_t = pl.pallas_call(
        kernel,
        out_shape=jax.ShapeDtypeStruct((T, Lp), x.dtype),
        grid=grid,
        in_specs=[
            pl.BlockSpec((T, TL), lambda j: (0, j)),     # x (time x lanes)
            pl.BlockSpec((1, TL), lambda j: (0, j)),     # affine weight per lane
            pl.BlockSpec((1, TL), lambda j: (0, j)),     # affine bias per lane
        ],
        out_specs=pl.BlockSpec((T, TL), lambda j: (0, j)),
        compiler_params=pltpu.CompilerParams(
            dimension_semantics=("parallel",),
            vmem_limit_bytes=vmem_limit,
        ),
        cost_estimate=pl.CostEstimate(
            flops=6 * B * T * C,
            transcendentals=B * C,
            bytes_accessed=2 * B * T * C * itemsize,
        ),
    )(x_t, w_l, b_l)

    if Lp != L:
        out_t = out_t[:, :L]
    return jnp.transpose(out_t.reshape(T, B, C), (1, 0, 2))


def block_revin_norm_ref(x, w, b, *, masking_ratio: float, eps: float = 1e-5):
    """Pure-JAX reference mirroring the PyTorch BlockRevIN exactly."""
    B, T, C = x.shape
    enc_len = T - int(masking_ratio * T)
    x_enc = x[:, :enc_len, :]
    mean = jnp.mean(x_enc, axis=1, keepdims=True)
    var = jnp.var(x_enc, axis=1, keepdims=True)          # population (unbiased=False)
    stdev = jnp.sqrt(var + eps)
    x_norm = (x - mean) / stdev
    return x_norm * w.reshape(1, 1, C) + b.reshape(1, 1, C)


if __name__ == "__main__":
    key = jax.random.PRNGKey(0)

    # Small demo shape consistent with the module: (batch, seq_len, channels).
    B, T, C = 2, 16, 8
    masking_ratio = 0.25          # enc_len = 16 - 4 = 12 -> exercises masked prefix
    x = jax.random.normal(key, (B, T, C), dtype=jnp.float32) * 3.0 + 1.5

    # Deterministic non-trivial affine params (module init is ones/zeros; use
    # distinct values so the affine path is actually verified).
    affine_weight = 1.0 + 0.1 * jnp.arange(C, dtype=jnp.float32)
    affine_bias = 0.05 * jnp.arange(C, dtype=jnp.float32)

    out = block_revin_norm(x, affine_weight, affine_bias,
                           masking_ratio=masking_ratio)
    out = jax.block_until_ready(out)
    ref = block_revin_norm_ref(x, affine_weight, affine_bias,
                               masking_ratio=masking_ratio)
    assert out.shape == (B, T, C)
    assert jnp.allclose(out, ref, atol=2e-5, rtol=2e-5), "mismatch vs reference"

    # Second tiny config to exercise the lane-padding (B*C=160 -> 256) path.
    B2, T2, C2 = 4, 24, 40
    k2 = jax.random.PRNGKey(0)
    x2 = jax.random.normal(k2, (B2, T2, C2), dtype=jnp.float32) * 2.0 - 0.5
    w2 = 1.0 - 0.01 * jnp.arange(C2, dtype=jnp.float32)
    b2 = 0.02 * jnp.arange(C2, dtype=jnp.float32)
    out2 = jax.block_until_ready(
        block_revin_norm(x2, w2, b2, masking_ratio=0.5))
    ref2 = block_revin_norm_ref(x2, w2, b2, masking_ratio=0.5)
    assert out2.shape == (B2, T2, C2)
    assert jnp.allclose(out2, ref2, atol=2e-5, rtol=2e-5), "mismatch (padded path)"

    print("KERNEL_OK")
</pallas_src>

<mosaic_0001>
module attributes {stable_mosaic.version = 11 : i64} {
  func.func @_block_revin_kernel(%arg0: i32, %arg1: memref<16x16xf32, #tpu.memory_space<vmem>>, %arg2: memref<1x16xf32, #tpu.memory_space<vmem>>, %arg3: memref<1x16xf32, #tpu.memory_space<vmem>>, %arg4: memref<16x16xf32, #tpu.memory_space<vmem>>) attributes {dimension_semantics = [#tpu.dimension_semantics<parallel>], iteration_bounds = array<i64: 1>, scalar_prefetch = 0 : i64, scratch_operands = 0 : i64, tpu.core_type = #tpu.core_type<tc>, window_params = [{transform_indices = @transform_0, window_bounds = array<i64: 16, 16>}, {transform_indices = @transform_1, window_bounds = array<i64: 1, 16>}, {transform_indices = @transform_2, window_bounds = array<i64: 1, 16>}, {transform_indices = @transform_3, window_bounds = array<i64: 16, 16>}]} {
    %c0 = arith.constant 0 : index
    %c0_0 = arith.constant 0 : index
    %0 = vector.load %arg1[%c0, %c0_0] : memref<16x16xf32, #tpu.memory_space<vmem>>, vector<16x16xf32>
    %1 = tpu.iota {dimensions = array<i32: 0>} : vector<16x16xi32>
    %c12_i32 = arith.constant 12 : i32
    %2 = vector.broadcast %c12_i32 : i32 to vector<16x16xi32>
    %3 = arith.cmpi slt, %1, %2 : vector<16x16xi32>
    %cst = arith.constant 0.000000e+00 : f32
    %4 = vector.broadcast %cst : f32 to vector<16x16xf32>
    %5 = arith.select %3, %0, %4 : vector<16x16xi1>, vector<16x16xf32>
    %cst_1 = arith.constant dense<0.000000e+00> : vector<16xf32>
    %6 = vector.multi_reduction <add>, %5, %cst_1 [0] : vector<16x16xf32> to vector<16xf32>
    %7 = vector.shape_cast %6 : vector<16xf32> to vector<1x16xf32>
    %cst_2 = arith.constant 0.0833333358 : f32
    %8 = vector.broadcast %cst_2 : f32 to vector<1x16xf32>
    %9 = arith.mulf %7, %8 : vector<1x16xf32>
    %10 = vector.broadcast %9 : vector<1x16xf32> to vector<16x16xf32>
    %11 = arith.subf %5, %10 : vector<16x16xf32>
    %12 = arith.mulf %11, %11 : vector<16x16xf32>
    %cst_3 = arith.constant dense<0.000000e+00> : vector<16xf32>
    %13 = vector.multi_reduction <add>, %12, %cst_3 [0] : vector<16x16xf32> to vector<16xf32>
    %14 = vector.shape_cast %13 : vector<16xf32> to vector<1x16xf32>
    %15 = arith.mulf %9, %9 : vector<1x16xf32>
    %cst_4 = arith.constant 4.000000e+00 : f32
    %16 = vector.broadcast %cst_4 : f32 to vector<1x16xf32>
    %17 = arith.mulf %16, %15 : vector<1x16xf32>
    %18 = arith.subf %14, %17 : vector<1x16xf32>
    %cst_5 = arith.constant 0.0833333358 : f32
    %19 = vector.broadcast %cst_5 : f32 to vector<1x16xf32>
    %20 = arith.mulf %18, %19 : vector<1x16xf32>
    %cst_6 = arith.constant 9.99999974E-6 : f32
    %21 = vector.broadcast %cst_6 : f32 to vector<1x16xf32>
    %22 = arith.addf %20, %21 : vector<1x16xf32>
    %23 = math.rsqrt %22 : vector<1x16xf32>
    %c0_7 = arith.constant 0 : index
    %c0_8 = arith.constant 0 : index
    %24 = vector.load %arg2[%c0_7, %c0_8] : memref<1x16xf32, #tpu.memory_space<vmem>>, vector<1x16xf32>
    %c0_9 = arith.constant 0 : index
    %c0_10 = arith.constant 0 : index
    %25 = vector.load %arg3[%c0_9, %c0_10] : memref<1x16xf32, #tpu.memory_space<vmem>>, vector<1x16xf32>
    %26 = arith.mulf %24, %23 : vector<1x16xf32>
    %27 = arith.mulf %9, %26 : vector<1x16xf32>
    %28 = arith.subf %25, %27 : vector<1x16xf32>
    %29 = vector.broadcast %26 : vector<1x16xf32> to vector<16x16xf32>
    %30 = arith.mulf %0, %29 : vector<16x16xf32>
    %31 = vector.broadcast %28 : vector<1x16xf32> to vector<16x16xf32>
    %32 = arith.addf %30, %31 : vector<16x16xf32>
    %c0_11 = arith.constant 0 : index
    %c0_12 = arith.constant 0 : index
    %33 = vector.load %arg4[%c0_11, %c0_12] : memref<16x16xf32, #tpu.memory_space<vmem>>, vector<16x16xf32>
    tpu.vector_store %arg4[%c0_11, %c0_12], %32 {strides = array<i32>} : memref<16x16xf32, #tpu.memory_space<vmem>>, vector<16x16xf32>,
    return
  }
  func.func @transform_0(%arg0: i32) -> (i32, i32) {
    %c0_i32 = arith.constant 0 : i32
    %c0_i32_0 = arith.constant 0 : i32
    return %c0_i32, %arg0 : i32, i32
  }
  func.func @transform_1(%arg0: i32) -> (i32, i32) {
    %c0_i32 = arith.constant 0 : i32
    %c0_i32_0 = arith.constant 0 : i32
    return %c0_i32, %arg0 : i32, i32
  }
  func.func @transform_2(%arg0: i32) -> (i32, i32) {
    %c0_i32 = arith.constant 0 : i32
    %c0_i32_0 = arith.constant 0 : i32
    return %c0_i32, %arg0 : i32, i32
  }
  func.func @transform_3(%arg0: i32) -> (i32, i32) {
    %c0_i32 = arith.constant 0 : i32
    %c0_i32_0 = arith.constant 0 : i32
    return %c0_i32, %arg0 : i32, i32
  }
}

</mosaic_0001>

<llo_original>
// kernel: tpu_custom_call.1
$region0: #{tpu_custom_call.1}
  #allocation0 [shape = 'u32[]', space=smem, size = 0x4, offset = 0x4, fixed_abs, tag = 'smem constant byte address 0x4 - core index']
  #allocation1 [shape = 'u32[144,128]{1,0:T(1,128)}', space=vmem, size = 0x12000, scoped, tag = 'internal scratch']
  %s0 = inlined_call_operand.hbm [shape: f32[16,16], index: 0, kind: input, shape index: {}]
  %s1 = inlined_call_operand.vmem [shape: f32[1,16], index: 1, kind: input, shape index: {}]
  %s2 = inlined_call_operand.vmem [shape: f32[1,16], index: 2, kind: input, shape index: {}]
  %s3 = inlined_call_operand.hbm [shape: f32[16,16], index: 3, kind: output, shape index: {}]
  %s4 = sld [smem:[#allocation0]]
  $region26: #{tpu_custom_call.1} parent=0
    _
  %s6 = ssub.s32 1, %s4
  %s7 = scalar_select 0, %s6, %s4
  $region1: #{tpu_custom_call.1} parent=0
    #allocation2 [shape = 'u8[8192]{0}', space=vmem, size = 0x2000, scoped, tag = 'input window, operand 0, single buffered']
    #allocation3 [shape = 's32[1]{0}', space=sflag, size = 0x4, scoped, tag = 'scoped memory for tpu_custom_call.1']
    #allocation4 [shape = 's32[1]{0}', space=sflag, size = 0x4, scoped, tag = 'scoped memory for tpu_custom_call.1']
    #allocation5 [shape = 'u8[8192]{0}', space=vmem, size = 0x2000, scoped, tag = 'output window, operand 0, single buffered']
    %8 = vsyncpa [#allocation3], 0
    %9 = vsyncpa [#allocation4], 0
    // Predicated region
    $region2: #{tpu_custom_call.1} parent=1 // pred_check
      _
    $region3: #{tpu_custom_call.1} parent=1 // pred_check_branch
      %11 = sbr.rel (0) target = $region5
    $region4: #{tpu_custom_call.1} parent=1 // pred_region
      %s13 = ssub.s32 256, 256
      %14 = vsyncadd [#allocation3], %s13
      %s15 = sshll.u32 [#allocation2], 4
      %s16 = int_to_ptr.vmem [resolvable:$true] %s15
      %21 = dma.hbm_to_vmem [thread:$0]  %s0, 256, %s16, [#allocation3], 128, 128, 8
    $region5: #{tpu_custom_call.1} parent=1 // pred_fallthru
      _
    // Predicated region
    $region6: #{tpu_custom_call.1} parent=1 // pred_check
      _
    $region7: #{tpu_custom_call.1} parent=1 // pred_check_branch
      %23 = sbr.rel (0) target = $region9
    $region8: #{tpu_custom_call.1} parent=1 // pred_region
      _
    $region9: #{tpu_custom_call.1} parent=1 // pred_fallthru
      _
    // Predicated region
    $region10: #{tpu_custom_call.1} parent=1 // pred_check
      _
    $region11: #{tpu_custom_call.1} parent=1 // pred_check_branch
      %25 = sbr.rel (0) target = $region13
    $region12: #{tpu_custom_call.1} parent=1 // pred_region
      _
    $region13: #{tpu_custom_call.1} parent=1 // pred_fallthru
      _
    // Predicated region
    $region14: #{tpu_custom_call.1} parent=1 // pred_check
      _
    $region15: #{tpu_custom_call.1} parent=1 // pred_check_branch
      %27 = sbr.rel (0) target = $region17
    $region16: #{tpu_custom_call.1} parent=1 // pred_region
      %28 = dma.done [#allocation3], 256
    $region17: #{tpu_custom_call.1} parent=1 // pred_fallthru
      _
    %v29 = vld [vmem:[#allocation2] sm:$0xff]
    %v30 = vld [vmem:[#allocation2 + $0x8] sm:$0xff]
    %v31 = vlaneseq
    %v32 = vshrl.u32 %v31, 7
    %v33 = vadd.s32 %v32, 8
    %vm34 = vcmp.lt.s32.totalorder %v32, 12
    %vm35 = vcmp.lt.s32.totalorder %v33, 12
    %v36 = vsel %vm34, %v29, 0.0
    %v37 = vsel %vm35, %v30, 0.0
    %vm38 = vcmask 130048
    %v39 = vsel %vm38, %v36, 0.0
    %v40 = vsel %vm38, %v37, 0.0
    %v41 = vadd.f32 %v39, %v40
    %v42 = vrot.slane %v41, 4
    %v43 = vadd.f32 %v41, %v42
    %v44 = vrot.slane %v43, 2
    %v45 = vadd.f32 %v43, %v44
    %v46 = vrot.slane %v45, 1
    %v47 = vadd.f32 %v45, %v46
    %v48 = vmul.f32 %v47, 0.083333336
    %v49 = vsub.f32 %v36, %v48
    %v50 = vsub.f32 %v37, %v48
    %v51 = vmul.f32 %v49, %v49
    %v52 = vmul.f32 %v50, %v50
    %v53 = vsel %vm38, %v51, 0.0
    %v54 = vsel %vm38, %v52, 0.0
    %v55 = vadd.f32 %v53, %v54
    %v56 = vrot.slane %v55, 4
    %v57 = vadd.f32 %v55, %v56
    %v58 = vrot.slane %v57, 2
    %v59 = vadd.f32 %v57, %v58
    %v60 = vrot.slane %v59, 1
    %v61 = vadd.f32 %v59, %v60
    %v62 = vmul.f32 %v48, %v48
    %v63 = vmul.f32 %v62, 4.0
    %v64 = vsub.f32 %v61, %v63
    %v65 = vmul.f32 %v64, 0.083333336
    %v66 = vadd.f32 %v65, 1e-05
    %v67 = vrsqrt.pop %v66
    %v68 = vld [vmem:[%s1] sm:$0x1]
    %v69 = vld [vmem:[%s2] sm:$0x1]
    %v70 = vmul.f32 %v68, %v67
    %v71 = vmul.f32 %v48, %v70
    %v72 = vsub.f32 %v69, %v71
    %v74 = vlaneseq
    %v75 = vshrl.u32 %v74, 7
    %v76 = vsub.s32 0, %v75
    %v77 = vrot.slane %v70, %v76
    %v79 = vmul.f32 %v29, %v77
    %v80 = vmul.f32 %v30, %v77
    %v82 = vlaneseq
    %v83 = vshrl.u32 %v82, 7
    %v84 = vsub.s32 0, %v83
    %v85 = vrot.slane %v72, %v84
    %v87 = vadd.f32 %v79, %v85
    %v88 = vadd.f32 %v80, %v85
    %89 = vst.msk [vmem:[#allocation5] sm:$0xff] %vm38, %v87
    %90 = vst.msk [vmem:[#allocation5 + $0x8] sm:$0xff] %vm38, %v88
    // Predicated region
    $region18: #{tpu_custom_call.1} parent=1 // pred_check
      _
    $region19: #{tpu_custom_call.1} parent=1 // pred_check_branch
      %92 = sbr.rel (0) target = $region21
    $region20: #{tpu_custom_call.1} parent=1 // pred_region
      %s94 = ssub.s32 256, 256
      %95 = vsyncadd [#allocation4], %s94
      %s96 = sshll.u32 [#allocation5], 4
      %s97 = int_to_ptr.vmem [resolvable:$true] %s96
      %102 = dma.vmem_to_hbm [thread:$0]  %s97, 256, %s3, [#allocation4], 128, 128, 8
    $region21: #{tpu_custom_call.1} parent=1 // pred_fallthru
      _
    // Predicated region
    $region22: #{tpu_custom_call.1} parent=1 // pred_check
      _
    $region23: #{tpu_custom_call.1} parent=1 // pred_check_branch
      %104 = sbr.rel (0) target = $region25
    $region24: #{tpu_custom_call.1} parent=1 // pred_region
      %105 = dma.done [#allocation4], 256
    $region25: #{tpu_custom_call.1} parent=1 // pred_fallthru
      _
    %106 = vsyncpa [#allocation3], 1
    %107 = vsyncpa [#allocation4], 1

</llo_original>
